<compile_context>
chip_gen: v6e
topology: v6e:2x2x1
jax: 0.10.0
libtpu: 0.0.40
codegen_flags: <defaults>
</compile_context>

<pallas_src>
import jax
import jax.numpy as jnp
from jax.experimental import pallas as pl
from jax.experimental.pallas import tpu as pltpu

_LANE = 128     # lane width (last dim of a vreg)
_SUBLANE = 8    # fp32 sublane width (second-to-last dim)


def _round_up(x, m):
    return ((x + m - 1) // m) * m


def _soft_q_kernel(s_ref, a_ref, w1_ref, w2_ref, w3_ref, bias_ref, o_ref, x_scr):
    # MXU input dtype follows the (possibly bf16) weight dtype; accumulation is
    # always fp32 via preferred_element_type.  Bias add / ReLU stay fp32
    # (v5e has no bf16 VPU).
    mxu_dtype = w1_ref.dtype
    d_s = s_ref.shape[1]
    d_in = x_scr.shape[1]

    # Fused concat: write state and action into one (tb, d_s+d_a) fp32 scratch
    # so layer 1 is a SINGLE MXU pass over the stacked W1.
    x_scr[:, :d_s] = s_ref[...]
    x_scr[:, d_s:d_in] = a_ref[...]
    x = x_scr[...].astype(mxu_dtype)

    # Packed bias/vector rows (all fp32): 0=b1, 1=b2, 2=b3, 3=w4 row,
    # 4=b4 broadcast across lanes, 5..7=zero padding.
    b1 = bias_ref[0:1, :]
    b2 = bias_ref[1:2, :]
    b3 = bias_ref[2:3, :]
    w4 = bias_ref[3:4, :]

    h = jnp.dot(x, w1_ref[...], preferred_element_type=jnp.float32)
    h = jnp.maximum(h + b1, 0.0)
    h = jnp.maximum(
        jnp.dot(h.astype(mxu_dtype), w2_ref[...],
                preferred_element_type=jnp.float32) + b2, 0.0)
    h = jnp.maximum(
        jnp.dot(h.astype(mxu_dtype), w3_ref[...],
                preferred_element_type=jnp.float32) + b3, 0.0)

    # Layer 4 (out_features == 1): VPU multiply + XLU lane reduce, no MXU pass
    # with a single output column.
    q = jnp.sum(h * w4, axis=-1, keepdims=True)

    # Lane-dense store (unmasked vst): broadcast the scalar column across the
    # 128 output lanes; bias row 4 holds b4 in every lane, so adding its
    # (1, 128) slice applies the final bias.  The wrapper slices column 0.
    n_lanes = o_ref.shape[1]
    o_ref[...] = (jnp.broadcast_to(q, o_ref.shape)
                  + bias_ref[4:5, :n_lanes]).astype(o_ref.dtype)


def init_soft_q_params(key, num_inputs, num_actions, hidden_size, init_w=0.003):
    """Init mirroring PyTorch nn.Linear defaults (weights stored [in, out]).

    nn.Linear default: U(-1/sqrt(fan_in), 1/sqrt(fan_in)) for weight and bias.
    linear4 is overridden to U(-init_w, init_w) as in the module's __init__.
    """
    def linear(key, fan_in, fan_out, bound):
        kw, kb = jax.random.split(key)
        w = jax.random.uniform(kw, (fan_in, fan_out), jnp.float32, -bound, bound)
        b = jax.random.uniform(kb, (1, fan_out), jnp.float32, -bound, bound)
        return w, b

    d_in = num_inputs + num_actions
    k1, k2, k3, k4 = jax.random.split(key, 4)
    l1 = linear(k1, d_in, hidden_size, 1.0 / float(jnp.sqrt(d_in)))
    l2 = linear(k2, hidden_size, hidden_size, 1.0 / float(jnp.sqrt(hidden_size)))
    l3 = linear(k3, hidden_size, hidden_size, 1.0 / float(jnp.sqrt(hidden_size)))
    l4 = linear(k4, hidden_size, 1, init_w)
    return (l1, l2, l3, l4)


def prepare_soft_q_params(params, mxu_dtype=jnp.bfloat16):
    """One-time layout prep (call outside the hot loop).

    * zero-pads the hidden dim to a multiple of 128 lanes (exact no-op through
      ReLU / the w4 reduce),
    * keeps W1 stacked [state; action] rows for the single fused layer-1 pass,
    * packs b1/b2/b3/w4-row/b4 into one (8, H_pad) fp32 array,
    * casts MXU weights (W1, W2, W3) to bf16 by default (fp32 accumulation in
      the kernel); pass mxu_dtype=jnp.float32 for exact-reference checks.
    """
    (w1, b1), (w2, b2), (w3, b3), (w4, b4) = params
    hidden = w1.shape[1]
    hp = _round_up(hidden, _LANE)

    def pad_row(v):
        v = v.reshape(-1)
        return jnp.pad(v, (0, hp - v.shape[0]))

    w1p = jnp.pad(w1, ((0, 0), (0, hp - hidden))).astype(mxu_dtype)          # (d_in, hp)
    w2p = jnp.pad(w2, ((0, hp - hidden), (0, hp - hidden))).astype(mxu_dtype)
    w3p = jnp.pad(w3, ((0, hp - hidden), (0, hp - hidden))).astype(mxu_dtype)

    rows = [pad_row(b1), pad_row(b2), pad_row(b3), pad_row(w4[:, 0]),
            jnp.full((hp,), b4[0, 0], jnp.float32)]
    rows += [jnp.zeros((hp,), jnp.float32)] * 3                               # pad to 8 sublanes
    bias_pack = jnp.stack(rows, axis=0).astype(jnp.float32)                   # (8, hp)

    return (w1p, w2p, w3p, bias_pack)


def soft_q_forward(state, action, kparams, *, tile_b=256):
    """Pallas forward of SoftQNetwork.

    state:   [B, num_inputs]  float32
    action:  [B, num_actions] float32
    kparams: output of prepare_soft_q_params
    returns  [B, 1] float32
    """
    b, d_s = state.shape
    _, d_a = action.shape
    w1p, w2p, w3p, bias_pack = kparams
    hp = w2p.shape[0]

    # Batch tile: multiple of 8 sublanes.  Cap it so the grid has >= 2 steps
    # whenever the batch allows, so "parallel" can shard across both v7x TCs;
    # tiny batches collapse to one 8-row block.
    tb = _round_up(min(tile_b, _round_up(b, _SUBLANE)), _SUBLANE)
    bp_min = _round_up(b, _SUBLANE)
    if bp_min > _SUBLANE:
        tb = min(tb, _round_up((bp_min + 1) // 2, _SUBLANE))
    bp = _round_up(b, tb)
    if bp != b:
        state = jnp.pad(state, ((0, bp - b), (0, 0)))
        action = jnp.pad(action, ((0, bp - b), (0, 0)))

    def batch_map(i):
        return (i, 0)

    def const_map(i):
        return (0, 0)

    # VMEM budget: weights (x2 in case single-buffering falls back to default)
    # + double-buffered activation/output tiles + fp32 intermediates + headroom,
    # clamped to [32 MiB default, 64 MiB v7x physical].
    w_bytes = (w1p.size * w1p.dtype.itemsize + w2p.size * w2p.dtype.itemsize
               + w3p.size * w3p.dtype.itemsize + bias_pack.size * 4)
    est = (2 * w_bytes + 2 * tb * (d_s + d_a) * 4 + 2 * tb * _LANE * 4
           + 6 * tb * hp * 4 + tb * (d_s + d_a) * 4 + (2 << 20))
    vmem_limit = int(min(max(est, 32 << 20), 64 << 20))

    def call(single_buffer_weights):
        if single_buffer_weights:
            def const_spec(shape):
                # Constant block index -> double buffering buys nothing.
                return pl.BlockSpec(shape, const_map, pipeline_mode=pl.Buffered(1))
        else:
            def const_spec(shape):
                return pl.BlockSpec(shape, const_map)

        in_specs = [
            pl.BlockSpec((tb, d_s), batch_map),   # state  (batch-tiled)
            pl.BlockSpec((tb, d_a), batch_map),   # action (batch-tiled)
            const_spec(w1p.shape),                # weights: VMEM-resident
            const_spec(w2p.shape),
            const_spec(w3p.shape),
            const_spec(bias_pack.shape),          # packed biases + w4 row + b4
        ]
        return pl.pallas_call(
            _soft_q_kernel,
            out_shape=jax.ShapeDtypeStruct((bp, _LANE), jnp.float32),
            grid=(bp // tb,),
            in_specs=in_specs,
            out_specs=pl.BlockSpec((tb, _LANE), batch_map),
            scratch_shapes=[pltpu.VMEM((tb, d_s + d_a), jnp.float32)],
            compiler_params=pltpu.CompilerParams(
                dimension_semantics=("parallel",),   # megacore-shard the batch axis
                vmem_limit_bytes=vmem_limit),
        )(state, action, w1p, w2p, w3p, bias_pack)

    try:
        out_padded = call(True)
    except Exception:
        # pipeline_mode=pl.Buffered(1) not supported on this jax build;
        # fall back to default double buffering (correctness unchanged).
        out_padded = call(False)

    return out_padded[:b, :1]


def soft_q_reference(state, action, params):
    """Pure-JAX reference matching the PyTorch forward."""
    x = jnp.concatenate([state, action], axis=1)
    (w1, b1), (w2, b2), (w3, b3), (w4, b4) = params
    x = jnp.maximum(x @ w1 + b1, 0.0)
    x = jnp.maximum(x @ w2 + b2, 0.0)
    x = jnp.maximum(x @ w3 + b3, 0.0)
    return x @ w4 + b4


if __name__ == "__main__":
    key = jax.random.PRNGKey(0)
    k_state, k_action, k_params = jax.random.split(key, 3)

    batch = 2
    num_inputs = 8
    num_actions = 4
    hidden_size = 32

    state = jax.random.normal(k_state, (batch, num_inputs), jnp.float32)
    action = jax.random.normal(k_action, (batch, num_actions), jnp.float32)
    params = init_soft_q_params(k_params, num_inputs, num_actions, hidden_size)

    ref = soft_q_reference(state, action, params)

    # 1) fp32 MXU operands: exact match against the PyTorch-equivalent reference.
    out_f32 = soft_q_forward(
        state, action, prepare_soft_q_params(params, mxu_dtype=jnp.float32))
    out_f32 = jax.block_until_ready(out_f32)
    assert out_f32.shape == (batch, 1), out_f32.shape
    assert jnp.allclose(out_f32, ref, atol=1e-5, rtol=1e-5), (out_f32, ref)

    # 2) default path (bf16 MXU operands, fp32 accumulation): loose tolerance.
    out_bf16 = soft_q_forward(state, action, prepare_soft_q_params(params))
    out_bf16 = jax.block_until_ready(out_bf16)
    assert out_bf16.shape == (batch, 1), out_bf16.shape
    assert jnp.allclose(out_bf16, ref, atol=5e-2, rtol=5e-2), (out_bf16, ref)

    print("KERNEL_OK")
</pallas_src>

<mosaic_0001>
module attributes {stable_mosaic.version = 11 : i64} {
  func.func @_soft_q_kernel(%arg0: i32, %arg1: memref<8x8xf32, #tpu.memory_space<vmem>>, %arg2: memref<8x4xf32, #tpu.memory_space<vmem>>, %arg3: memref<12x128xf32, #tpu.memory_space<vmem>>, %arg4: memref<128x128xf32, #tpu.memory_space<vmem>>, %arg5: memref<128x128xf32, #tpu.memory_space<vmem>>, %arg6: memref<8x128xf32, #tpu.memory_space<vmem>>, %arg7: memref<8x128xf32, #tpu.memory_space<vmem>>, %arg8: memref<8x12xf32, #tpu.memory_space<vmem>>) attributes {dimension_semantics = [#tpu.dimension_semantics<parallel>], iteration_bounds = array<i64: 1>, scalar_prefetch = 0 : i64, scratch_operands = 1 : i64, tpu.core_type = #tpu.core_type<tc>, window_params = [{transform_indices = @transform_0, window_bounds = array<i64: 8, 8>}, {transform_indices = @transform_1, window_bounds = array<i64: 8, 4>}, {pipeline_mode = #tpu.pipeline_mode<synchronous>, transform_indices = @transform_2, window_bounds = array<i64: 12, 128>}, {pipeline_mode = #tpu.pipeline_mode<synchronous>, transform_indices = @transform_3, window_bounds = array<i64: 128, 128>}, {pipeline_mode = #tpu.pipeline_mode<synchronous>, transform_indices = @transform_4, window_bounds = array<i64: 128, 128>}, {pipeline_mode = #tpu.pipeline_mode<synchronous>, transform_indices = @transform_5, window_bounds = array<i64: 8, 128>}, {transform_indices = @transform_6, window_bounds = array<i64: 8, 128>}]} {
    %c0 = arith.constant 0 : index
    %c0_0 = arith.constant 0 : index
    %0 = vector.load %arg1[%c0, %c0_0] : memref<8x8xf32, #tpu.memory_space<vmem>>, vector<8x8xf32>
    %c0_1 = arith.constant 0 : index
    %c0_2 = arith.constant 0 : index
    %1 = vector.load %arg8[%c0_1, %c0_2] : memref<8x12xf32, #tpu.memory_space<vmem>>, vector<8x8xf32>
    tpu.vector_store %arg8[%c0_1, %c0_2], %0 {strides = array<i32>} : memref<8x12xf32, #tpu.memory_space<vmem>>, vector<8x8xf32>,
    %c0_3 = arith.constant 0 : index
    %c0_4 = arith.constant 0 : index
    %2 = vector.load %arg2[%c0_3, %c0_4] : memref<8x4xf32, #tpu.memory_space<vmem>>, vector<8x4xf32>
    %c0_5 = arith.constant 0 : index
    %c8 = arith.constant 8 : index
    %3 = vector.load %arg8[%c0_5, %c8] : memref<8x12xf32, #tpu.memory_space<vmem>>, vector<8x4xf32>
    tpu.vector_store %arg8[%c0_5, %c8], %2 {strides = array<i32>} : memref<8x12xf32, #tpu.memory_space<vmem>>, vector<8x4xf32>,
    %c0_6 = arith.constant 0 : index
    %c0_7 = arith.constant 0 : index
    %4 = vector.load %arg8[%c0_6, %c0_7] : memref<8x12xf32, #tpu.memory_space<vmem>>, vector<8x12xf32>
    %c0_8 = arith.constant 0 : index
    %c0_9 = arith.constant 0 : index
    %5 = vector.load %arg6[%c0_8, %c0_9] : memref<8x128xf32, #tpu.memory_space<vmem>>, vector<1x128xf32>
    %c1 = arith.constant 1 : index
    %c0_10 = arith.constant 0 : index
    %6 = vector.load %arg6[%c1, %c0_10] : memref<8x128xf32, #tpu.memory_space<vmem>>, vector<1x128xf32>
    %c2 = arith.constant 2 : index
    %c0_11 = arith.constant 0 : index
    %7 = vector.load %arg6[%c2, %c0_11] : memref<8x128xf32, #tpu.memory_space<vmem>>, vector<1x128xf32>
    %c3 = arith.constant 3 : index
    %c0_12 = arith.constant 0 : index
    %8 = vector.load %arg6[%c3, %c0_12] : memref<8x128xf32, #tpu.memory_space<vmem>>, vector<1x128xf32>
    %c0_13 = arith.constant 0 : index
    %c0_14 = arith.constant 0 : index
    %9 = vector.load %arg3[%c0_13, %c0_14] : memref<12x128xf32, #tpu.memory_space<vmem>>, vector<12x128xf32>
    %cst = arith.constant dense<0.000000e+00> : vector<8x128xf32>
    %10 = tpu.matmul %4, %9, %cst {dimension_numbers = #tpu.dot_dimension_numbers<[1], [0], [0], [1], [0, 0, 1, 1], [], []>} : vector<8x12xf32>, vector<12x128xf32>, vector<8x128xf32> -> vector<8x128xf32>
    %11 = vector.broadcast %5 : vector<1x128xf32> to vector<8x128xf32>
    %12 = arith.addf %10, %11 : vector<8x128xf32>
    %cst_15 = arith.constant 0.000000e+00 : f32
    %13 = vector.broadcast %cst_15 : f32 to vector<8x128xf32>
    %14 = arith.maximumf %12, %13 : vector<8x128xf32>
    %c0_16 = arith.constant 0 : index
    %c0_17 = arith.constant 0 : index
    %15 = vector.load %arg4[%c0_16, %c0_17] : memref<128x128xf32, #tpu.memory_space<vmem>>, vector<128x128xf32>
    %cst_18 = arith.constant dense<0.000000e+00> : vector<8x128xf32>
    %16 = tpu.matmul %14, %15, %cst_18 {dimension_numbers = #tpu.dot_dimension_numbers<[1], [0], [0], [1], [0, 0, 1, 1], [], []>} : vector<8x128xf32>, vector<128x128xf32>, vector<8x128xf32> -> vector<8x128xf32>
    %17 = vector.broadcast %6 : vector<1x128xf32> to vector<8x128xf32>
    %18 = arith.addf %16, %17 : vector<8x128xf32>
    %cst_19 = arith.constant 0.000000e+00 : f32
    %19 = vector.broadcast %cst_19 : f32 to vector<8x128xf32>
    %20 = arith.maximumf %18, %19 : vector<8x128xf32>
    %c0_20 = arith.constant 0 : index
    %c0_21 = arith.constant 0 : index
    %21 = vector.load %arg5[%c0_20, %c0_21] : memref<128x128xf32, #tpu.memory_space<vmem>>, vector<128x128xf32>
    %cst_22 = arith.constant dense<0.000000e+00> : vector<8x128xf32>
    %22 = tpu.matmul %20, %21, %cst_22 {dimension_numbers = #tpu.dot_dimension_numbers<[1], [0], [0], [1], [0, 0, 1, 1], [], []>} : vector<8x128xf32>, vector<128x128xf32>, vector<8x128xf32> -> vector<8x128xf32>
    %23 = vector.broadcast %7 : vector<1x128xf32> to vector<8x128xf32>
    %24 = arith.addf %22, %23 : vector<8x128xf32>
    %cst_23 = arith.constant 0.000000e+00 : f32
    %25 = vector.broadcast %cst_23 : f32 to vector<8x128xf32>
    %26 = arith.maximumf %24, %25 : vector<8x128xf32>
    %27 = vector.broadcast %8 : vector<1x128xf32> to vector<8x128xf32>
    %28 = arith.mulf %26, %27 : vector<8x128xf32>
    %cst_24 = arith.constant dense<0.000000e+00> : vector<8xf32>
    %29 = vector.multi_reduction <add>, %28, %cst_24 [1] : vector<8x128xf32> to vector<8xf32>
    %30 = vector.shape_cast %29 : vector<8xf32> to vector<8x1xf32>
    %31 = vector.shape_cast %30 : vector<8x1xf32> to vector<8x1xf32>
    %32 = vector.broadcast %31 : vector<8x1xf32> to vector<8x128xf32>
    %c4 = arith.constant 4 : index
    %c0_25 = arith.constant 0 : index
    %33 = vector.load %arg6[%c4, %c0_25] : memref<8x128xf32, #tpu.memory_space<vmem>>, vector<1x128xf32>
    %34 = vector.broadcast %33 : vector<1x128xf32> to vector<8x128xf32>
    %35 = arith.addf %32, %34 : vector<8x128xf32>
    %c0_26 = arith.constant 0 : index
    %c0_27 = arith.constant 0 : index
    %36 = vector.load %arg7[%c0_26, %c0_27] : memref<8x128xf32, #tpu.memory_space<vmem>>, vector<8x128xf32>
    tpu.vector_store %arg7[%c0_26, %c0_27], %35 {strides = array<i32>} : memref<8x128xf32, #tpu.memory_space<vmem>>, vector<8x128xf32>,
    return
  }
  func.func @transform_0(%arg0: i32) -> (i32, i32) {
    %c0_i32 = arith.constant 0 : i32
    %c0_i32_0 = arith.constant 0 : i32
    return %arg0, %c0_i32 : i32, i32
  }
  func.func @transform_1(%arg0: i32) -> (i32, i32) {
    %c0_i32 = arith.constant 0 : i32
    %c0_i32_0 = arith.constant 0 : i32
    return %arg0, %c0_i32 : i32, i32
  }
  func.func @transform_2(%arg0: i32) -> (i32, i32) {
    %c0_i32 = arith.constant 0 : i32
    %c0_i32_0 = arith.constant 0 : i32
    %c0_i32_1 = arith.constant 0 : i32
    return %c0_i32, %c0_i32_0 : i32, i32
  }
  func.func @transform_3(%arg0: i32) -> (i32, i32) {
    %c0_i32 = arith.constant 0 : i32
    %c0_i32_0 = arith.constant 0 : i32
    %c0_i32_1 = arith.constant 0 : i32
    return %c0_i32, %c0_i32_0 : i32, i32
  }
  func.func @transform_4(%arg0: i32) -> (i32, i32) {
    %c0_i32 = arith.constant 0 : i32
    %c0_i32_0 = arith.constant 0 : i32
    %c0_i32_1 = arith.constant 0 : i32
    return %c0_i32, %c0_i32_0 : i32, i32
  }
  func.func @transform_5(%arg0: i32) -> (i32, i32) {
    %c0_i32 = arith.constant 0 : i32
    %c0_i32_0 = arith.constant 0 : i32
    %c0_i32_1 = arith.constant 0 : i32
    return %c0_i32, %c0_i32_0 : i32, i32
  }
  func.func @transform_6(%arg0: i32) -> (i32, i32) {
    %c0_i32 = arith.constant 0 : i32
    %c0_i32_0 = arith.constant 0 : i32
    return %arg0, %c0_i32 : i32, i32
  }
}

module attributes {stable_mosaic.version = 11 : i64} {
  func.func @_soft_q_kernel(%arg0: i32, %arg1: memref<8x8xf32, #tpu.memory_space<vmem>>, %arg2: memref<8x4xf32, #tpu.memory_space<vmem>>, %arg3: memref<12x128xf32, #tpu.memory_space<vmem>>, %arg4: memref<128x128xf32, #tpu.memory_space<vmem>>, %arg5: memref<128x128xf32, #tpu.memory_space<vmem>>, %arg6: memref<8x128xf32, #tpu.memory_space<vmem>>, %arg7: memref<8x128xf32, #tpu.memory_space<vmem>>, %arg8: memref<8x12xf32, #tpu.memory_space<vmem>>) attributes {dimension_semantics = [#tpu.dimension_semantics<parallel>], iteration_bounds = array<i64: 1>, scalar_prefetch = 0 : i64, scratch_operands = 1 : i64, tpu.core_type = #tpu.core_type<tc>, window_params = [{transform_indices = @transform_0, window_bounds = array<i64: 8, 8>}, {transform_indices = @transform_1, window_bounds = array<i64: 8, 4>}, {pipeline_mode = #tpu.pipeline_mode<synchronous>, transform_indices = @transform_2, window_bounds = array<i64: 12, 128>}, {pipeline_mode = #tpu.pipeline_mode<synchronous>, transform_indices = @transform_3, window_bounds = array<i64: 128, 128>}, {pipeline_mode = #tpu.pipeline_mode<synchronous>, transform_indices = @transform_4, window_bounds = array<i64: 128, 128>}, {pipeline_mode = #tpu.pipeline_mode<synchronous>, transform_indices = @transform_5, window_bounds = array<i64: 8, 128>}, {transform_indices = @transform_6, window_bounds = array<i64: 8, 128>}]} {
    %c0 = arith.constant 0 : index
    %c0_0 = arith.constant 0 : index
    %0 = vector.load %arg1[%c0, %c0_0] : memref<8x8xf32, #tpu.memory_space<vmem>>, vector<8x8xf32>
    %c0_1 = arith.constant 0 : index
    %c0_2 = arith.constant 0 : index
    %1 = vector.load %arg8[%c0_1, %c0_2] : memref<8x12xf32, #tpu.memory_space<vmem>>, vector<8x8xf32>
    tpu.vector_store %arg8[%c0_1, %c0_2], %0 {strides = array<i32>} : memref<8x12xf32, #tpu.memory_space<vmem>>, vector<8x8xf32>,
    %c0_3 = arith.constant 0 : index
    %c0_4 = arith.constant 0 : index
    %2 = vector.load %arg2[%c0_3, %c0_4] : memref<8x4xf32, #tpu.memory_space<vmem>>, vector<8x4xf32>
    %c0_5 = arith.constant 0 : index
    %c8 = arith.constant 8 : index
    %3 = vector.load %arg8[%c0_5, %c8] : memref<8x12xf32, #tpu.memory_space<vmem>>, vector<8x4xf32>
    tpu.vector_store %arg8[%c0_5, %c8], %2 {strides = array<i32>} : memref<8x12xf32, #tpu.memory_space<vmem>>, vector<8x4xf32>,
    %c0_6 = arith.constant 0 : index
    %c0_7 = arith.constant 0 : index
    %4 = vector.load %arg8[%c0_6, %c0_7] : memref<8x12xf32, #tpu.memory_space<vmem>>, vector<8x12xf32>
    %c0_8 = arith.constant 0 : index
    %c0_9 = arith.constant 0 : index
    %5 = vector.load %arg6[%c0_8, %c0_9] : memref<8x128xf32, #tpu.memory_space<vmem>>, vector<1x128xf32>
    %c1 = arith.constant 1 : index
    %c0_10 = arith.constant 0 : index
    %6 = vector.load %arg6[%c1, %c0_10] : memref<8x128xf32, #tpu.memory_space<vmem>>, vector<1x128xf32>
    %c2 = arith.constant 2 : index
    %c0_11 = arith.constant 0 : index
    %7 = vector.load %arg6[%c2, %c0_11] : memref<8x128xf32, #tpu.memory_space<vmem>>, vector<1x128xf32>
    %c3 = arith.constant 3 : index
    %c0_12 = arith.constant 0 : index
    %8 = vector.load %arg6[%c3, %c0_12] : memref<8x128xf32, #tpu.memory_space<vmem>>, vector<1x128xf32>
    %c0_13 = arith.constant 0 : index
    %c0_14 = arith.constant 0 : index
    %9 = vector.load %arg3[%c0_13, %c0_14] : memref<12x128xf32, #tpu.memory_space<vmem>>, vector<12x128xf32>
    %cst = arith.constant dense<0.000000e+00> : vector<8x128xf32>
    %10 = tpu.matmul %4, %9, %cst {dimension_numbers = #tpu.dot_dimension_numbers<[1], [0], [0], [1], [0, 0, 1, 1], [], []>} : vector<8x12xf32>, vector<12x128xf32>, vector<8x128xf32> -> vector<8x128xf32>
    %11 = vector.broadcast %5 : vector<1x128xf32> to vector<8x128xf32>
    %12 = arith.addf %10, %11 : vector<8x128xf32>
    %cst_15 = arith.constant 0.000000e+00 : f32
    %13 = vector.broadcast %cst_15 : f32 to vector<8x128xf32>
    %14 = arith.maximumf %12, %13 : vector<8x128xf32>
    %c0_16 = arith.constant 0 : index
    %c0_17 = arith.constant 0 : index
    %15 = vector.load %arg4[%c0_16, %c0_17] : memref<128x128xf32, #tpu.memory_space<vmem>>, vector<128x128xf32>
    %cst_18 = arith.constant dense<0.000000e+00> : vector<8x128xf32>
    %16 = tpu.matmul %14, %15, %cst_18 {dimension_numbers = #tpu.dot_dimension_numbers<[1], [0], [0], [1], [0, 0, 1, 1], [], []>} : vector<8x128xf32>, vector<128x128xf32>, vector<8x128xf32> -> vector<8x128xf32>
    %17 = vector.broadcast %6 : vector<1x128xf32> to vector<8x128xf32>
    %18 = arith.addf %16, %17 : vector<8x128xf32>
    %cst_19 = arith.constant 0.000000e+00 : f32
    %19 = vector.broadcast %cst_19 : f32 to vector<8x128xf32>
    %20 = arith.maximumf %18, %19 : vector<8x128xf32>
    %c0_20 = arith.constant 0 : index
    %c0_21 = arith.constant 0 : index
    %21 = vector.load %arg5[%c0_20, %c0_21] : memref<128x128xf32, #tpu.memory_space<vmem>>, vector<128x128xf32>
    %cst_22 = arith.constant dense<0.000000e+00> : vector<8x128xf32>
    %22 = tpu.matmul %20, %21, %cst_22 {dimension_numbers = #tpu.dot_dimension_numbers<[1], [0], [0], [1], [0, 0, 1, 1], [], []>} : vector<8x128xf32>, vector<128x128xf32>, vector<8x128xf32> -> vector<8x128xf32>
    %23 = vector.broadcast %7 : vector<1x128xf32> to vector<8x128xf32>
    %24 = arith.addf %22, %23 : vector<8x128xf32>
    %cst_23 = arith.constant 0.000000e+00 : f32
    %25 = vector.broadcast %cst_23 : f32 to vector<8x128xf32>
    %26 = arith.maximumf %24, %25 : vector<8x128xf32>
    %27 = vector.broadcast %8 : vector<1x128xf32> to vector<8x128xf32>
    %28 = arith.mulf %26, %27 : vector<8x128xf32>
    %cst_24 = arith.constant dense<0.000000e+00> : vector<8xf32>
    %29 = vector.multi_reduction <add>, %28, %cst_24 [1] : vector<8x128xf32> to vector<8xf32>
    %30 = vector.shape_cast %29 : vector<8xf32> to vector<8x1xf32>
    %31 = vector.shape_cast %30 : vector<8x1xf32> to vector<8x1xf32>
    %32 = vector.broadcast %31 : vector<8x1xf32> to vector<8x128xf32>
    %c4 = arith.constant 4 : index
    %c0_25 = arith.constant 0 : index
    %33 = vector.load %arg6[%c4, %c0_25] : memref<8x128xf32, #tpu.memory_space<vmem>>, vector<1x128xf32>
    %34 = vector.broadcast %33 : vector<1x128xf32> to vector<8x128xf32>
    %35 = arith.addf %32, %34 : vector<8x128xf32>
    %c0_26 = arith.constant 0 : index
    %c0_27 = arith.constant 0 : index
    %36 = vector.load %arg7[%c0_26, %c0_27] : memref<8x128xf32, #tpu.memory_space<vmem>>, vector<8x128xf32>
    tpu.vector_store %arg7[%c0_26, %c0_27], %35 {strides = array<i32>} : memref<8x128xf32, #tpu.memory_space<vmem>>, vector<8x128xf32>,
    return
  }
  func.func @transform_0(%arg0: i32) -> (i32, i32) {
    %c0_i32 = arith.constant 0 : i32
    %c0_i32_0 = arith.constant 0 : i32
    return %arg0, %c0_i32 : i32, i32
  }
  func.func @transform_1(%arg0: i32) -> (i32, i32) {
    %c0_i32 = arith.constant 0 : i32
    %c0_i32_0 = arith.constant 0 : i32
    return %arg0, %c0_i32 : i32, i32
  }
  func.func @transform_2(%arg0: i32) -> (i32, i32) {
    %c0_i32 = arith.constant 0 : i32
    %c0_i32_0 = arith.constant 0 : i32
    %c0_i32_1 = arith.constant 0 : i32
    return %c0_i32, %c0_i32_0 : i32, i32
  }
  func.func @transform_3(%arg0: i32) -> (i32, i32) {
    %c0_i32 = arith.constant 0 : i32
    %c0_i32_0 = arith.constant 0 : i32
    %c0_i32_1 = arith.constant 0 : i32
    return %c0_i32, %c0_i32_0 : i32, i32
  }
  func.func @transform_4(%arg0: i32) -> (i32, i32) {
    %c0_i32 = arith.constant 0 : i32
    %c0_i32_0 = arith.constant 0 : i32
    %c0_i32_1 = arith.constant 0 : i32
    return %c0_i32, %c0_i32_0 : i32, i32
  }
  func.func @transform_5(%arg0: i32) -> (i32, i32) {
    %c0_i32 = arith.constant 0 : i32
    %c0_i32_0 = arith.constant 0 : i32
    %c0_i32_1 = arith.constant 0 : i32
    return %c0_i32, %c0_i32_0 : i32, i32
  }
  func.func @transform_6(%arg0: i32) -> (i32, i32) {
    %c0_i32 = arith.constant 0 : i32
    %c0_i32_0 = arith.constant 0 : i32
    return %arg0, %c0_i32 : i32, i32
  }
}

</mosaic_0001>

<llo_original>
// kernel: tpu_custom_call.1
$region0: #{tpu_custom_call.1}
  #allocation0 [shape = 'u32[]', space=smem, size = 0x4, offset = 0x4, fixed_abs, tag = 'smem constant byte address 0x4 - core index']
  #allocation1 [shape = 'u32[144,128]{1,0:T(1,128)}', space=vmem, size = 0x12000, scoped, tag = 'internal scratch']
  #allocation2 [shape = 'f32[8,12]{1,0:T(8,128)}', space=vmem, size = 0x1000, scoped, tag = 'scratch operand']
  %s0 = inlined_call_operand.vmem [shape: f32[8,8], index: 0, kind: input, shape index: {}]
  %s1 = inlined_call_operand.vmem [shape: f32[8,4], index: 1, kind: input, shape index: {}]
  %s2 = inlined_call_operand.hbm [shape: f32[12,128], index: 2, kind: input, shape index: {}]
  %s3 = inlined_call_operand.hbm [shape: f32[128,128], index: 3, kind: input, shape index: {}]
  %s4 = inlined_call_operand.hbm [shape: f32[128,128], index: 4, kind: input, shape index: {}]
  %s5 = inlined_call_operand.vmem [shape: f32[8,128], index: 5, kind: input, shape index: {}]
  %s6 = inlined_call_operand.hbm [shape: f32[8,128], index: 6, kind: output, shape index: {}]
  %s7 = sld [smem:[#allocation0]]
  $region46: #{tpu_custom_call.1} parent=0
    _
  %s9 = ssub.s32 1, %s7
  %s10 = scalar_select 0, %s9, %s7
  $region1: #{tpu_custom_call.1} parent=0
    #allocation3 [shape = 'u8[8192]{0}', space=vmem, size = 0x2000, scoped, tag = 'input window, operand 2, single buffered']
    #allocation4 [shape = 's32[1]{0}', space=sflag, size = 0x4, scoped, tag = 'scoped memory for tpu_custom_call.1']
    #allocation5 [shape = 's32[1]{0}', space=sflag, size = 0x4, scoped, tag = 'scoped memory for tpu_custom_call.1']
    #allocation6 [shape = 'u8[65536]{0}', space=vmem, size = 0x10000, scoped, tag = 'input window, operand 3, single buffered']
    #allocation7 [shape = 's32[1]{0}', space=sflag, size = 0x4, scoped, tag = 'scoped memory for tpu_custom_call.1']
    #allocation8 [shape = 'u8[65536]{0}', space=vmem, size = 0x10000, scoped, tag = 'input window, operand 4, single buffered']
    #allocation9 [shape = 'u8[4096]{0}', space=vmem, size = 0x1000, scoped, tag = 'output window, operand 0, single buffered']
    %11 = vsyncpa [#allocation4], 0
    %12 = vsyncpa [#allocation7], 0
    %13 = vsyncpa [#allocation5], 0
    // Predicated region
    $region2: #{tpu_custom_call.1} parent=1 // pred_check
      _
    $region3: #{tpu_custom_call.1} parent=1 // pred_check_branch
      %15 = sbr.rel (0) target = $region5
    $region4: #{tpu_custom_call.1} parent=1 // pred_region
      _
    $region5: #{tpu_custom_call.1} parent=1 // pred_fallthru
      _
    // Predicated region
    $region6: #{tpu_custom_call.1} parent=1 // pred_check
      _
    $region7: #{tpu_custom_call.1} parent=1 // pred_check_branch
      %17 = sbr.rel (0) target = $region9
    $region8: #{tpu_custom_call.1} parent=1 // pred_region
      _
    $region9: #{tpu_custom_call.1} parent=1 // pred_fallthru
      _
    // Predicated region
    $region10: #{tpu_custom_call.1} parent=1 // pred_check
      _
    $region11: #{tpu_custom_call.1} parent=1 // pred_check_branch
      %19 = sbr.rel (0) target = $region13
    $region12: #{tpu_custom_call.1} parent=1 // pred_region
      %s21 = ssub.s32 256, 256
      %22 = vsyncadd [#allocation4], %s21
      %s23 = sshll.u32 [#allocation3], 4
      %s24 = int_to_ptr.vmem [resolvable:$true] %s23
      %29 = dma.hbm_to_vmem [thread:$0]  %s2, 256, %s24, [#allocation4], 128, 128, 8
    $region13: #{tpu_custom_call.1} parent=1 // pred_fallthru
      _
    // Predicated region
    $region14: #{tpu_custom_call.1} parent=1 // pred_check
      _
    $region15: #{tpu_custom_call.1} parent=1 // pred_check_branch
      %31 = sbr.rel (0) target = $region17
    $region16: #{tpu_custom_call.1} parent=1 // pred_region
      %s33 = ssub.s32 2048, 2048
      %34 = vsyncadd [#allocation7], %s33
      %s35 = sshll.u32 [#allocation6], 4
      %s36 = int_to_ptr.vmem [resolvable:$true] %s35
      %41 = dma.hbm_to_vmem [thread:$0]  %s3, 2048, %s36, [#allocation7], 128, 128, 8
    $region17: #{tpu_custom_call.1} parent=1 // pred_fallthru
      _
    // Predicated region
    $region18: #{tpu_custom_call.1} parent=1 // pred_check
      _
    $region19: #{tpu_custom_call.1} parent=1 // pred_check_branch
      %43 = sbr.rel (0) target = $region21
    $region20: #{tpu_custom_call.1} parent=1 // pred_region
      %s45 = ssub.s32 2048, 2048
      %46 = vsyncadd [#allocation7], %s45
      %s47 = sshll.u32 [#allocation8], 4
      %s48 = int_to_ptr.vmem [resolvable:$true] %s47
      %53 = dma.hbm_to_vmem [thread:$0]  %s4, 2048, %s48, [#allocation7], 128, 128, 8
    $region21: #{tpu_custom_call.1} parent=1 // pred_fallthru
      _
    // Predicated region
    $region22: #{tpu_custom_call.1} parent=1 // pred_check
      _
    $region23: #{tpu_custom_call.1} parent=1 // pred_check_branch
      %55 = sbr.rel (0) target = $region25
    $region24: #{tpu_custom_call.1} parent=1 // pred_region
      _
    $region25: #{tpu_custom_call.1} parent=1 // pred_fallthru
      _
    // Predicated region
    $region26: #{tpu_custom_call.1} parent=1 // pred_check
      _
    $region27: #{tpu_custom_call.1} parent=1 // pred_check_branch
      %57 = sbr.rel (0) target = $region29
    $region28: #{tpu_custom_call.1} parent=1 // pred_region
      %58 = dma.done [#allocation4], 256
    $region29: #{tpu_custom_call.1} parent=1 // pred_fallthru
      _
    // Predicated region
    $region30: #{tpu_custom_call.1} parent=1 // pred_check
      _
    $region31: #{tpu_custom_call.1} parent=1 // pred_check_branch
      %60 = sbr.rel (0) target = $region33
    $region32: #{tpu_custom_call.1} parent=1 // pred_region
      %61 = dma.done [#allocation7], 2048
    $region33: #{tpu_custom_call.1} parent=1 // pred_fallthru
      _
    // Predicated region
    $region34: #{tpu_custom_call.1} parent=1 // pred_check
      _
    $region35: #{tpu_custom_call.1} parent=1 // pred_check_branch
      %63 = sbr.rel (0) target = $region37
    $region36: #{tpu_custom_call.1} parent=1 // pred_region
      %64 = dma.done [#allocation7], 2048
    $region37: #{tpu_custom_call.1} parent=1 // pred_fallthru
      _
    %v65 = vld [vmem:[%s0] sm:$0xff]
    %vm66 = vcmask 64512
    %67 = vst.msk [vmem:[#allocation2] sm:$0xff] %vm66, %v65
    %v68 = vld [vmem:[%s1] sm:$0xff]
    %70 = vrot.lane.b32.xlu0 %v68, 8
    %v71 = vpop.permute.xlu0 %70
    %vm73 = vcmask 97344
    %74 = vst.msk [vmem:[#allocation2] sm:$0xff] %vm73, %v71
    %v75 = vld [vmem:[#allocation2] sm:$0xff]
    %v76 = vld [vmem:[%s5] sm:$0x1]
    %v77 = vld [vmem:[%s5 + $0x1] sm:$0x1]
    %v78 = vld [vmem:[%s5 + $0x2] sm:$0x1]
    %v79 = vld [vmem:[%s5 + $0x3] sm:$0x1]
    %v80 = vld [vmem:[#allocation3] sm:$0xff]
    %v81 = vld [vmem:[#allocation3 + $0x8] sm:$0xf]
    %v82 = vlaneseq
    %v83 = vshrl.u32 %v82, 7
    %v84 = vsub.s32 0, %v83
    %v85 = vrot.slane %v76, %v84
    %vm86 = vcmask 97280
    %v88 = vsel %vm86, %v75, 0
    %vm90 = vcmask 1043456
    %v92 = vsel %vm90, %v81, 0
    %94 = vmatprep.subr.mxu0 0.0
    %95 = vmatpush1.msra.mxu0 0.0
    %96 = vmatprep.subr.mxu0 0.0
    %97 = vmatpush1.msra.mxu0 0.0
    %98 = vmatprep.subr.mxu0 0.0
    %99 = vmatpush1.msra.mxu0 0.0
    %100 = vmatprep.subr.mxu0 0.0
    %101 = vmatpush1.msra.mxu0 0.0
    %102 = vmatprep.subr.mxu0 0.0
    %103 = vmatpush1.msra.mxu0 0.0
    %104 = vmatprep.subr.mxu0 0.0
    %105 = vmatpush1.msra.mxu0 0.0
    %106 = vmatprep.subr.mxu0 0.0
    %107 = vmatpush1.msra.mxu0 0.0
    %108 = vmatprep.subr.mxu0 0.0
    %109 = vmatpush1.msra.mxu0 0.0
    %110 = vmatprep.subr.mxu0 0.0
    %111 = vmatpush1.msra.mxu0 0.0
    %112 = vmatprep.subr.mxu0 0.0
    %113 = vmatpush1.msra.mxu0 0.0
    %114 = vmatprep.subr.mxu0 0.0
    %115 = vmatpush1.msra.mxu0 0.0
    %116 = vmatprep.subr.mxu0 0.0
    %117 = vmatpush1.msra.mxu0 0.0
    %118 = vmatprep.subr.mxu0 0.0
    %119 = vmatpush1.msra.mxu0 0.0
    %120 = vmatprep.subr.mxu0 0.0
    %121 = vmatpush1.msra.mxu0 0.0
    %122 = vmatprep.subr.mxu0 0.0
    %123 = vmatpush1.msra.mxu0 %v92
    %124 = vmatprep.subr.mxu0 0.0
    %125 = vmatpush1.msra.mxu0 %v80
    %126 = vmatprep.subr.mxu0 0.0
    %127 = vmatpush2.msra.mxu0 0.0
    %128 = vmatprep.subr.mxu0 0.0
    %129 = vmatpush2.msra.mxu0 0.0
    %130 = vmatprep.subr.mxu0 0.0
    %131 = vmatpush2.msra.mxu0 0.0
    %132 = vmatprep.subr.mxu0 0.0
    %133 = vmatpush2.msra.mxu0 0.0
    %134 = vmatprep.subr.mxu0 0.0
    %135 = vmatpush2.msra.mxu0 0.0
    %136 = vmatprep.subr.mxu0 0.0
    %137 = vmatpush2.msra.mxu0 0.0
    %138 = vmatprep.subr.mxu0 0.0
    %139 = vmatpush2.msra.mxu0 0.0
    %140 = vmatprep.subr.mxu0 0.0
    %141 = vmatpush2.msra.mxu0 0.0
    %142 = vmatprep.subr.mxu0 0.0
    %143 = vmatpush2.msra.mxu0 0.0
    %144 = vmatprep.subr.mxu0 0.0
    %145 = vmatpush2.msra.mxu0 0.0
    %146 = vmatprep.subr.mxu0 0.0
    %147 = vmatpush2.msra.mxu0 0.0
    %148 = vmatprep.subr.mxu0 0.0
    %149 = vmatpush2.msra.mxu0 0.0
    %150 = vmatprep.subr.mxu0 0.0
    %151 = vmatpush2.msra.mxu0 0.0
    %152 = vmatprep.subr.mxu0 0.0
    %153 = vmatpush2.msra.mxu0 0.0
    %154 = vmatprep.subr.mxu0 0.0
    %155 = vmatpush2.msra.mxu0 0.0
    %156 = vmatprep.subr.mxu0 0.0
    %157 = vmatpush2.msra.mxu0 0.0
    %158 = vmatprep.mubr.f32.mxu0 0.0
    %159 = vmatmul.mubr.f32.gmra.mxu0 %v88
    %v160 = vpop.f32.mrf.mxu0
    %v161 = vadd.f32 %v85, %v160
    %v162 = vpop.f32.mrf.mxu0
    %163 = vdwg.mxu0
    %v164 = vmax.f32 %v161, 0.0
    %v165 = vld [vmem:[#allocation6] sm:$0xff]
    %v166 = vld [vmem:[#allocation6 + $0x8] sm:$0xff]
    %v167 = vld [vmem:[#allocation6 + $0x10] sm:$0xff]
    %v168 = vld [vmem:[#allocation6 + $0x18] sm:$0xff]
    %v169 = vld [vmem:[#allocation6 + $0x20] sm:$0xff]
    %v170 = vld [vmem:[#allocation6 + $0x28] sm:$0xff]
    %v171 = vld [vmem:[#allocation6 + $0x30] sm:$0xff]
    %v172 = vld [vmem:[#allocation6 + $0x38] sm:$0xff]
    %v173 = vld [vmem:[#allocation6 + $0x40] sm:$0xff]
    %v174 = vld [vmem:[#allocation6 + $0x48] sm:$0xff]
    %v175 = vld [vmem:[#allocation6 + $0x50] sm:$0xff]
    %v176 = vld [vmem:[#allocation6 + $0x58] sm:$0xff]
    %v177 = vld [vmem:[#allocation6 + $0x60] sm:$0xff]
    %v178 = vld [vmem:[#allocation6 + $0x68] sm:$0xff]
    %v179 = vld [vmem:[#allocation6 + $0x70] sm:$0xff]
    %v180 = vld [vmem:[#allocation6 + $0x78] sm:$0xff]
    %v181 = vlaneseq
    %v182 = vshrl.u32 %v181, 7
    %v183 = vsub.s32 0, %v182
    %v184 = vrot.slane %v77, %v183
    %185 = vmatprep.subr.mxu0 0.0
    %186 = vmatpush1.msra.mxu0 %v180
    %187 = vmatprep.subr.mxu0 0.0
    %188 = vmatpush1.msra.mxu0 %v179
    %189 = vmatprep.subr.mxu0 0.0
    %190 = vmatpush1.msra.mxu0 %v178
    %191 = vmatprep.subr.mxu0 0.0
    %192 = vmatpush1.msra.mxu0 %v177
    %193 = vmatprep.subr.mxu0 0.0
    %194 = vmatpush1.msra.mxu0 %v176
    %195 = vmatprep.subr.mxu0 0.0
    %196 = vmatpush1.msra.mxu0 %v175
    %197 = vmatprep.subr.mxu0 0.0
    %198 = vmatpush1.msra.mxu0 %v174
    %199 = vmatprep.subr.mxu0 0.0
    %200 = vmatpush1.msra.mxu0 %v173
    %201 = vmatprep.subr.mxu0 0.0
    %202 = vmatpush1.msra.mxu0 %v172
    %203 = vmatprep.subr.mxu0 0.0
    %204 = vmatpush1.msra.mxu0 %v171
    %205 = vmatprep.subr.mxu0 0.0
    %206 = vmatpush1.msra.mxu0 %v170
    %207 = vmatprep.subr.mxu0 0.0
    %208 = vmatpush1.msra.mxu0 %v169
    %209 = vmatprep.subr.mxu0 0.0
    %210 = vmatpush1.msra.mxu0 %v168
    %211 = vmatprep.subr.mxu0 0.0
    %212 = vmatpush1.msra.mxu0 %v167
    %213 = vmatprep.subr.mxu0 0.0
    %214 = vmatpush1.msra.mxu0 %v166
    %215 = vmatprep.subr.mxu0 0.0
    %216 = vmatpush1.msra.mxu0 %v165
    %217 = vmatprep.subr.mxu0 0.0
    %218 = vmatpush2.msra.mxu0 0.0
    %219 = vmatprep.subr.mxu0 0.0
    %220 = vmatpush2.msra.mxu0 0.0
    %221 = vmatprep.subr.mxu0 0.0
    %222 = vmatpush2.msra.mxu0 0.0
    %223 = vmatprep.subr.mxu0 0.0
    %224 = vmatpush2.msra.mxu0 0.0
    %225 = vmatprep.subr.mxu0 0.0
    %226 = vmatpush2.msra.mxu0 0.0
    %227 = vmatprep.subr.mxu0 0.0
    %228 = vmatpush2.msra.mxu0 0.0
    %229 = vmatprep.subr.mxu0 0.0
    %230 = vmatpush2.msra.mxu0 0.0
    %231 = vmatprep.subr.mxu0 0.0
    %232 = vmatpush2.msra.mxu0 0.0
    %233 = vmatprep.subr.mxu0 0.0
    %234 = vmatpush2.msra.mxu0 0.0
    %235 = vmatprep.subr.mxu0 0.0
    %236 = vmatpush2.msra.mxu0 0.0
    %237 = vmatprep.subr.mxu0 0.0
    %238 = vmatpush2.msra.mxu0 0.0
    %239 = vmatprep.subr.mxu0 0.0
    %240 = vmatpush2.msra.mxu0 0.0
    %241 = vmatprep.subr.mxu0 0.0
    %242 = vmatpush2.msra.mxu0 0.0
    %243 = vmatprep.subr.mxu0 0.0
    %244 = vmatpush2.msra.mxu0 0.0
    %245 = vmatprep.subr.mxu0 0.0
    %246 = vmatpush2.msra.mxu0 0.0
    %247 = vmatprep.subr.mxu0 0.0
    %248 = vmatpush2.msra.mxu0 0.0
    %249 = vmatprep.mubr.f32.mxu0 0.0
    %250 = vmatmul.mubr.f32.gmra.mxu0 %v164
    %v251 = vpop.f32.mrf.mxu0
    %v252 = vadd.f32 %v184, %v251
    %v253 = vpop.f32.mrf.mxu0
    %254 = vdwg.mxu0
    %v255 = vmax.f32 %v252, 0.0
    %v256 = vld [vmem:[#allocation8] sm:$0xff]
    %v257 = vld [vmem:[#allocation8 + $0x8] sm:$0xff]
    %v258 = vld [vmem:[#allocation8 + $0x10] sm:$0xff]
    %v259 = vld [vmem:[#allocation8 + $0x18] sm:$0xff]
    %v260 = vld [vmem:[#allocation8 + $0x20] sm:$0xff]
    %v261 = vld [vmem:[#allocation8 + $0x28] sm:$0xff]
    %v262 = vld [vmem:[#allocation8 + $0x30] sm:$0xff]
    %v263 = vld [vmem:[#allocation8 + $0x38] sm:$0xff]
    %v264 = vld [vmem:[#allocation8 + $0x40] sm:$0xff]
    %v265 = vld [vmem:[#allocation8 + $0x48] sm:$0xff]
    %v266 = vld [vmem:[#allocation8 + $0x50] sm:$0xff]
    %v267 = vld [vmem:[#allocation8 + $0x58] sm:$0xff]
    %v268 = vld [vmem:[#allocation8 + $0x60] sm:$0xff]
    %v269 = vld [vmem:[#allocation8 + $0x68] sm:$0xff]
    %v270 = vld [vmem:[#allocation8 + $0x70] sm:$0xff]
    %v271 = vld [vmem:[#allocation8 + $0x78] sm:$0xff]
    %v272 = vlaneseq
    %v273 = vshrl.u32 %v272, 7
    %v274 = vsub.s32 0, %v273
    %v275 = vrot.slane %v78, %v274
    %276 = vmatprep.subr.mxu0 0.0
    %277 = vmatpush1.msra.mxu0 %v271
    %278 = vmatprep.subr.mxu0 0.0
    %279 = vmatpush1.msra.mxu0 %v270
    %280 = vmatprep.subr.mxu0 0.0
    %281 = vmatpush1.msra.mxu0 %v269
    %282 = vmatprep.subr.mxu0 0.0
    %283 = vmatpush1.msra.mxu0 %v268
    %284 = vmatprep.subr.mxu0 0.0
    %285 = vmatpush1.msra.mxu0 %v267
    %286 = vmatprep.subr.mxu0 0.0
    %287 = vmatpush1.msra.mxu0 %v266
    %288 = vmatprep.subr.mxu0 0.0
    %289 = vmatpush1.msra.mxu0 %v265
    %290 = vmatprep.subr.mxu0 0.0
    %291 = vmatpush1.msra.mxu0 %v264
    %292 = vmatprep.subr.mxu0 0.0
    %293 = vmatpush1.msra.mxu0 %v263
    %294 = vmatprep.subr.mxu0 0.0
    %295 = vmatpush1.msra.mxu0 %v262
    %296 = vmatprep.subr.mxu0 0.0
    %297 = vmatpush1.msra.mxu0 %v261
    %298 = vmatprep.subr.mxu0 0.0
    %299 = vmatpush1.msra.mxu0 %v260
    %300 = vmatprep.subr.mxu0 0.0
    %301 = vmatpush1.msra.mxu0 %v259
    %302 = vmatprep.subr.mxu0 0.0
    %303 = vmatpush1.msra.mxu0 %v258
    %304 = vmatprep.subr.mxu0 0.0
    %305 = vmatpush1.msra.mxu0 %v257
    %306 = vmatprep.subr.mxu0 0.0
    %307 = vmatpush1.msra.mxu0 %v256
    %308 = vmatprep.subr.mxu0 0.0
    %309 = vmatpush2.msra.mxu0 0.0
    %310 = vmatprep.subr.mxu0 0.0
    %311 = vmatpush2.msra.mxu0 0.0
    %312 = vmatprep.subr.mxu0 0.0
    %313 = vmatpush2.msra.mxu0 0.0
    %314 = vmatprep.subr.mxu0 0.0
    %315 = vmatpush2.msra.mxu0 0.0
    %316 = vmatprep.subr.mxu0 0.0
    %317 = vmatpush2.msra.mxu0 0.0
    %318 = vmatprep.subr.mxu0 0.0
    %319 = vmatpush2.msra.mxu0 0.0
    %320 = vmatprep.subr.mxu0 0.0
    %321 = vmatpush2.msra.mxu0 0.0
    %322 = vmatprep.subr.mxu0 0.0
    %323 = vmatpush2.msra.mxu0 0.0
    %324 = vmatprep.subr.mxu0 0.0
    %325 = vmatpush2.msra.mxu0 0.0
    %326 = vmatprep.subr.mxu0 0.0
    %327 = vmatpush2.msra.mxu0 0.0
    %328 = vmatprep.subr.mxu0 0.0
    %329 = vmatpush2.msra.mxu0 0.0
    %330 = vmatprep.subr.mxu0 0.0
    %331 = vmatpush2.msra.mxu0 0.0
    %332 = vmatprep.subr.mxu0 0.0
    %333 = vmatpush2.msra.mxu0 0.0
    %334 = vmatprep.subr.mxu0 0.0
    %335 = vmatpush2.msra.mxu0 0.0
    %336 = vmatprep.subr.mxu0 0.0
    %337 = vmatpush2.msra.mxu0 0.0
    %338 = vmatprep.subr.mxu0 0.0
    %339 = vmatpush2.msra.mxu0 0.0
    %340 = vmatprep.mubr.f32.mxu0 0.0
    %341 = vmatmul.mubr.f32.gmra.mxu0 %v255
    %v342 = vpop.f32.mrf.mxu0
    %v343 = vadd.f32 %v275, %v342
    %v344 = vpop.f32.mrf.mxu0
    %345 = vdwg.mxu0
    %v346 = vmax.f32 %v343, 0.0
    %v347 = vlaneseq
    %v348 = vshrl.u32 %v347, 7
    %v349 = vsub.s32 0, %v348
    %v350 = vrot.slane %v79, %v349
    %v351 = vmul.f32 %v346, %v350
    %352 = vadd.xlane.f32.xlu0 %v351
    %v353 = vpop.xlane.xlu0 %352
    %v354 = vld [vmem:[%s5 + $0x4] sm:$0x1]
    %v355 = vlaneseq
    %v356 = vshrl.u32 %v355, 7
    %v357 = vsub.s32 0, %v356
    %v358 = vrot.slane %v354, %v357
    %v359 = vadd.f32 %v353, %v358
    %360 = vst [vmem:[#allocation9] sm:$0xff] %v359
    // Predicated region
    $region38: #{tpu_custom_call.1} parent=1 // pred_check
      _
    $region39: #{tpu_custom_call.1} parent=1 // pred_check_branch
      %362 = sbr.rel (0) target = $region41
    $region40: #{tpu_custom_call.1} parent=1 // pred_region
      %s364 = ssub.s32 128, 128
      %365 = vsyncadd [#allocation5], %s364
      %s367 = sshll.u32 [#allocation9], 4
      %s368 = int_to_ptr.vmem [resolvable:$true] %s367
      %370 = dma.vmem_to_hbm [thread:$0]  %s368, 128, %s6, [#allocation5]
    $region41: #{tpu_custom_call.1} parent=1 // pred_fallthru
      _
    // Predicated region
    $region42: #{tpu_custom_call.1} parent=1 // pred_check
      _
    $region43: #{tpu_custom_call.1} parent=1 // pred_check_branch
      %372 = sbr.rel (0) target = $region45
    $region44: #{tpu_custom_call.1} parent=1 // pred_region
      %373 = dma.done [#allocation5], 128
    $region45: #{tpu_custom_call.1} parent=1 // pred_fallthru
      _
    %374 = vsyncpa [#allocation4], 1
    %375 = vsyncpa [#allocation7], 1
    %376 = vsyncpa [#allocation5], 1

// kernel: tpu_custom_call.1
$region0: #{tpu_custom_call.1}
  #allocation0 [shape = 'u32[]', space=smem, size = 0x4, offset = 0x4, fixed_abs, tag = 'smem constant byte address 0x4 - core index']
  #allocation1 [shape = 'u32[144,128]{1,0:T(1,128)}', space=vmem, size = 0x12000, scoped, tag = 'internal scratch']
  #allocation2 [shape = 'f32[8,12]{1,0:T(8,128)}', space=vmem, size = 0x1000, scoped, tag = 'scratch operand']
  %s0 = inlined_call_operand.vmem [shape: f32[8,8], index: 0, kind: input, shape index: {}]
  %s1 = inlined_call_operand.vmem [shape: f32[8,4], index: 1, kind: input, shape index: {}]
  %s2 = inlined_call_operand.hbm [shape: f32[12,128], index: 2, kind: input, shape index: {}]
  %s3 = inlined_call_operand.hbm [shape: f32[128,128], index: 3, kind: input, shape index: {}]
  %s4 = inlined_call_operand.hbm [shape: f32[128,128], index: 4, kind: input, shape index: {}]
  %s5 = inlined_call_operand.vmem [shape: f32[8,128], index: 5, kind: input, shape index: {}]
  %s6 = inlined_call_operand.hbm [shape: f32[8,128], index: 6, kind: output, shape index: {}]
  %s7 = sld [smem:[#allocation0]]
  $region46: #{tpu_custom_call.1} parent=0
    _
  %s9 = ssub.s32 1, %s7
  %s10 = scalar_select 0, %s9, %s7
  $region1: #{tpu_custom_call.1} parent=0
    #allocation3 [shape = 'u8[8192]{0}', space=vmem, size = 0x2000, scoped, tag = 'input window, operand 2, single buffered']
    #allocation4 [shape = 's32[1]{0}', space=sflag, size = 0x4, scoped, tag = 'scoped memory for tpu_custom_call.1']
    #allocation5 [shape = 's32[1]{0}', space=sflag, size = 0x4, scoped, tag = 'scoped memory for tpu_custom_call.1']
    #allocation6 [shape = 'u8[65536]{0}', space=vmem, size = 0x10000, scoped, tag = 'input window, operand 3, single buffered']
    #allocation7 [shape = 's32[1]{0}', space=sflag, size = 0x4, scoped, tag = 'scoped memory for tpu_custom_call.1']
    #allocation8 [shape = 'u8[65536]{0}', space=vmem, size = 0x10000, scoped, tag = 'input window, operand 4, single buffered']
    #allocation9 [shape = 'u8[4096]{0}', space=vmem, size = 0x1000, scoped, tag = 'output window, operand 0, single buffered']
    %11 = vsyncpa [#allocation4], 0
    %12 = vsyncpa [#allocation7], 0
    %13 = vsyncpa [#allocation5], 0
    // Predicated region
    $region2: #{tpu_custom_call.1} parent=1 // pred_check
      _
    $region3: #{tpu_custom_call.1} parent=1 // pred_check_branch
      %15 = sbr.rel (0) target = $region5
    $region4: #{tpu_custom_call.1} parent=1 // pred_region
      _
    $region5: #{tpu_custom_call.1} parent=1 // pred_fallthru
      _
    // Predicated region
    $region6: #{tpu_custom_call.1} parent=1 // pred_check
      _
    $region7: #{tpu_custom_call.1} parent=1 // pred_check_branch
      %17 = sbr.rel (0) target = $region9
    $region8: #{tpu_custom_call.1} parent=1 // pred_region
      _
    $region9: #{tpu_custom_call.1} parent=1 // pred_fallthru
      _
    // Predicated region
    $region10: #{tpu_custom_call.1} parent=1 // pred_check
      _
    $region11: #{tpu_custom_call.1} parent=1 // pred_check_branch
      %19 = sbr.rel (0) target = $region13
    $region12: #{tpu_custom_call.1} parent=1 // pred_region
      %s21 = ssub.s32 256, 256
      %22 = vsyncadd [#allocation4], %s21
      %s23 = sshll.u32 [#allocation3], 4
      %s24 = int_to_ptr.vmem [resolvable:$true] %s23
      %29 = dma.hbm_to_vmem [thread:$0]  %s2, 256, %s24, [#allocation4], 128, 128, 8
    $region13: #{tpu_custom_call.1} parent=1 // pred_fallthru
      _
    // Predicated region
    $region14: #{tpu_custom_call.1} parent=1 // pred_check
      _
    $region15: #{tpu_custom_call.1} parent=1 // pred_check_branch
      %31 = sbr.rel (0) target = $region17
    $region16: #{tpu_custom_call.1} parent=1 // pred_region
      %s33 = ssub.s32 2048, 2048
      %34 = vsyncadd [#allocation7], %s33
      %s35 = sshll.u32 [#allocation6], 4
      %s36 = int_to_ptr.vmem [resolvable:$true] %s35
      %41 = dma.hbm_to_vmem [thread:$0]  %s3, 2048, %s36, [#allocation7], 128, 128, 8
    $region17: #{tpu_custom_call.1} parent=1 // pred_fallthru
      _
    // Predicated region
    $region18: #{tpu_custom_call.1} parent=1 // pred_check
      _
    $region19: #{tpu_custom_call.1} parent=1 // pred_check_branch
      %43 = sbr.rel (0) target = $region21
    $region20: #{tpu_custom_call.1} parent=1 // pred_region
      %s45 = ssub.s32 2048, 2048
      %46 = vsyncadd [#allocation7], %s45
      %s47 = sshll.u32 [#allocation8], 4
      %s48 = int_to_ptr.vmem [resolvable:$true] %s47
      %53 = dma.hbm_to_vmem [thread:$0]  %s4, 2048, %s48, [#allocation7], 128, 128, 8
    $region21: #{tpu_custom_call.1} parent=1 // pred_fallthru
      _
    // Predicated region
    $region22: #{tpu_custom_call.1} parent=1 // pred_check
      _
    $region23: #{tpu_custom_call.1} parent=1 // pred_check_branch
      %55 = sbr.rel (0) target = $region25
    $region24: #{tpu_custom_call.1} parent=1 // pred_region
      _
    $region25: #{tpu_custom_call.1} parent=1 // pred_fallthru
      _
    // Predicated region
    $region26: #{tpu_custom_call.1} parent=1 // pred_check
      _
    $region27: #{tpu_custom_call.1} parent=1 // pred_check_branch
      %57 = sbr.rel (0) target = $region29
    $region28: #{tpu_custom_call.1} parent=1 // pred_region
      %58 = dma.done [#allocation4], 256
    $region29: #{tpu_custom_call.1} parent=1 // pred_fallthru
      _
    // Predicated region
    $region30: #{tpu_custom_call.1} parent=1 // pred_check
      _
    $region31: #{tpu_custom_call.1} parent=1 // pred_check_branch
      %60 = sbr.rel (0) target = $region33
    $region32: #{tpu_custom_call.1} parent=1 // pred_region
      %61 = dma.done [#allocation7], 2048
    $region33: #{tpu_custom_call.1} parent=1 // pred_fallthru
      _
    // Predicated region
    $region34: #{tpu_custom_call.1} parent=1 // pred_check
      _
    $region35: #{tpu_custom_call.1} parent=1 // pred_check_branch
      %63 = sbr.rel (0) target = $region37
    $region36: #{tpu_custom_call.1} parent=1 // pred_region
      %64 = dma.done [#allocation7], 2048
    $region37: #{tpu_custom_call.1} parent=1 // pred_fallthru
      _
    %v65 = vld [vmem:[%s0] sm:$0xff]
    %vm66 = vcmask 64512
    %67 = vst.msk [vmem:[#allocation2] sm:$0xff] %vm66, %v65
    %v68 = vld [vmem:[%s1] sm:$0xff]
    %70 = vrot.lane.b32.xlu0 %v68, 8
    %v71 = vpop.permute.xlu0 %70
    %vm73 = vcmask 97344
    %74 = vst.msk [vmem:[#allocation2] sm:$0xff] %vm73, %v71
    %v75 = vld [vmem:[#allocation2] sm:$0xff]
    %v76 = vld [vmem:[%s5] sm:$0x1]
    %v77 = vld [vmem:[%s5 + $0x1] sm:$0x1]
    %v78 = vld [vmem:[%s5 + $0x2] sm:$0x1]
    %v79 = vld [vmem:[%s5 + $0x3] sm:$0x1]
    %v80 = vld [vmem:[#allocation3] sm:$0xff]
    %v81 = vld [vmem:[#allocation3 + $0x8] sm:$0xf]
    %v82 = vlaneseq
    %v83 = vshrl.u32 %v82, 7
    %v84 = vsub.s32 0, %v83
    %v85 = vrot.slane %v76, %v84
    %vm86 = vcmask 97280
    %v88 = vsel %vm86, %v75, 0
    %vm90 = vcmask 1043456
    %v92 = vsel %vm90, %v81, 0
    %94 = vmatprep.subr.mxu0 0.0
    %95 = vmatpush1.msra.mxu0 0.0
    %96 = vmatprep.subr.mxu0 0.0
    %97 = vmatpush1.msra.mxu0 0.0
    %98 = vmatprep.subr.mxu0 0.0
    %99 = vmatpush1.msra.mxu0 0.0
    %100 = vmatprep.subr.mxu0 0.0
    %101 = vmatpush1.msra.mxu0 0.0
    %102 = vmatprep.subr.mxu0 0.0
    %103 = vmatpush1.msra.mxu0 0.0
    %104 = vmatprep.subr.mxu0 0.0
    %105 = vmatpush1.msra.mxu0 0.0
    %106 = vmatprep.subr.mxu0 0.0
    %107 = vmatpush1.msra.mxu0 0.0
    %108 = vmatprep.subr.mxu0 0.0
    %109 = vmatpush1.msra.mxu0 0.0
    %110 = vmatprep.subr.mxu0 0.0
    %111 = vmatpush1.msra.mxu0 0.0
    %112 = vmatprep.subr.mxu0 0.0
    %113 = vmatpush1.msra.mxu0 0.0
    %114 = vmatprep.subr.mxu0 0.0
    %115 = vmatpush1.msra.mxu0 0.0
    %116 = vmatprep.subr.mxu0 0.0
    %117 = vmatpush1.msra.mxu0 0.0
    %118 = vmatprep.subr.mxu0 0.0
    %119 = vmatpush1.msra.mxu0 0.0
    %120 = vmatprep.subr.mxu0 0.0
    %121 = vmatpush1.msra.mxu0 0.0
    %122 = vmatprep.subr.mxu0 0.0
    %123 = vmatpush1.msra.mxu0 %v92
    %124 = vmatprep.subr.mxu0 0.0
    %125 = vmatpush1.msra.mxu0 %v80
    %126 = vmatprep.subr.mxu0 0.0
    %127 = vmatpush2.msra.mxu0 0.0
    %128 = vmatprep.subr.mxu0 0.0
    %129 = vmatpush2.msra.mxu0 0.0
    %130 = vmatprep.subr.mxu0 0.0
    %131 = vmatpush2.msra.mxu0 0.0
    %132 = vmatprep.subr.mxu0 0.0
    %133 = vmatpush2.msra.mxu0 0.0
    %134 = vmatprep.subr.mxu0 0.0
    %135 = vmatpush2.msra.mxu0 0.0
    %136 = vmatprep.subr.mxu0 0.0
    %137 = vmatpush2.msra.mxu0 0.0
    %138 = vmatprep.subr.mxu0 0.0
    %139 = vmatpush2.msra.mxu0 0.0
    %140 = vmatprep.subr.mxu0 0.0
    %141 = vmatpush2.msra.mxu0 0.0
    %142 = vmatprep.subr.mxu0 0.0
    %143 = vmatpush2.msra.mxu0 0.0
    %144 = vmatprep.subr.mxu0 0.0
    %145 = vmatpush2.msra.mxu0 0.0
    %146 = vmatprep.subr.mxu0 0.0
    %147 = vmatpush2.msra.mxu0 0.0
    %148 = vmatprep.subr.mxu0 0.0
    %149 = vmatpush2.msra.mxu0 0.0
    %150 = vmatprep.subr.mxu0 0.0
    %151 = vmatpush2.msra.mxu0 0.0
    %152 = vmatprep.subr.mxu0 0.0
    %153 = vmatpush2.msra.mxu0 0.0
    %154 = vmatprep.subr.mxu0 0.0
    %155 = vmatpush2.msra.mxu0 0.0
    %156 = vmatprep.subr.mxu0 0.0
    %157 = vmatpush2.msra.mxu0 0.0
    %158 = vmatprep.mubr.f32.mxu0 0.0
    %159 = vmatmul.mubr.f32.gmra.mxu0 %v88
    %v160 = vpop.f32.mrf.mxu0
    %v161 = vadd.f32 %v85, %v160
    %v162 = vpop.f32.mrf.mxu0
    %163 = vdwg.mxu0
    %v164 = vmax.f32 %v161, 0.0
    %v165 = vld [vmem:[#allocation6] sm:$0xff]
    %v166 = vld [vmem:[#allocation6 + $0x8] sm:$0xff]
    %v167 = vld [vmem:[#allocation6 + $0x10] sm:$0xff]
    %v168 = vld [vmem:[#allocation6 + $0x18] sm:$0xff]
    %v169 = vld [vmem:[#allocation6 + $0x20] sm:$0xff]
    %v170 = vld [vmem:[#allocation6 + $0x28] sm:$0xff]
    %v171 = vld [vmem:[#allocation6 + $0x30] sm:$0xff]
    %v172 = vld [vmem:[#allocation6 + $0x38] sm:$0xff]
    %v173 = vld [vmem:[#allocation6 + $0x40] sm:$0xff]
    %v174 = vld [vmem:[#allocation6 + $0x48] sm:$0xff]
    %v175 = vld [vmem:[#allocation6 + $0x50] sm:$0xff]
    %v176 = vld [vmem:[#allocation6 + $0x58] sm:$0xff]
    %v177 = vld [vmem:[#allocation6 + $0x60] sm:$0xff]
    %v178 = vld [vmem:[#allocation6 + $0x68] sm:$0xff]
    %v179 = vld [vmem:[#allocation6 + $0x70] sm:$0xff]
    %v180 = vld [vmem:[#allocation6 + $0x78] sm:$0xff]
    %v181 = vlaneseq
    %v182 = vshrl.u32 %v181, 7
    %v183 = vsub.s32 0, %v182
    %v184 = vrot.slane %v77, %v183
    %185 = vmatprep.subr.mxu0 0.0
    %186 = vmatpush1.msra.mxu0 %v180
    %187 = vmatprep.subr.mxu0 0.0
    %188 = vmatpush1.msra.mxu0 %v179
    %189 = vmatprep.subr.mxu0 0.0
    %190 = vmatpush1.msra.mxu0 %v178
    %191 = vmatprep.subr.mxu0 0.0
    %192 = vmatpush1.msra.mxu0 %v177
    %193 = vmatprep.subr.mxu0 0.0
    %194 = vmatpush1.msra.mxu0 %v176
    %195 = vmatprep.subr.mxu0 0.0
    %196 = vmatpush1.msra.mxu0 %v175
    %197 = vmatprep.subr.mxu0 0.0
    %198 = vmatpush1.msra.mxu0 %v174
    %199 = vmatprep.subr.mxu0 0.0
    %200 = vmatpush1.msra.mxu0 %v173
    %201 = vmatprep.subr.mxu0 0.0
    %202 = vmatpush1.msra.mxu0 %v172
    %203 = vmatprep.subr.mxu0 0.0
    %204 = vmatpush1.msra.mxu0 %v171
    %205 = vmatprep.subr.mxu0 0.0
    %206 = vmatpush1.msra.mxu0 %v170
    %207 = vmatprep.subr.mxu0 0.0
    %208 = vmatpush1.msra.mxu0 %v169
    %209 = vmatprep.subr.mxu0 0.0
    %210 = vmatpush1.msra.mxu0 %v168
    %211 = vmatprep.subr.mxu0 0.0
    %212 = vmatpush1.msra.mxu0 %v167
    %213 = vmatprep.subr.mxu0 0.0
    %214 = vmatpush1.msra.mxu0 %v166
    %215 = vmatprep.subr.mxu0 0.0
    %216 = vmatpush1.msra.mxu0 %v165
    %217 = vmatprep.subr.mxu0 0.0
    %218 = vmatpush2.msra.mxu0 0.0
    %219 = vmatprep.subr.mxu0 0.0
    %220 = vmatpush2.msra.mxu0 0.0
    %221 = vmatprep.subr.mxu0 0.0
    %222 = vmatpush2.msra.mxu0 0.0
    %223 = vmatprep.subr.mxu0 0.0
    %224 = vmatpush2.msra.mxu0 0.0
    %225 = vmatprep.subr.mxu0 0.0
    %226 = vmatpush2.msra.mxu0 0.0
    %227 = vmatprep.subr.mxu0 0.0
    %228 = vmatpush2.msra.mxu0 0.0
    %229 = vmatprep.subr.mxu0 0.0
    %230 = vmatpush2.msra.mxu0 0.0
    %231 = vmatprep.subr.mxu0 0.0
    %232 = vmatpush2.msra.mxu0 0.0
    %233 = vmatprep.subr.mxu0 0.0
    %234 = vmatpush2.msra.mxu0 0.0
    %235 = vmatprep.subr.mxu0 0.0
    %236 = vmatpush2.msra.mxu0 0.0
    %237 = vmatprep.subr.mxu0 0.0
    %238 = vmatpush2.msra.mxu0 0.0
    %239 = vmatprep.subr.mxu0 0.0
    %240 = vmatpush2.msra.mxu0 0.0
    %241 = vmatprep.subr.mxu0 0.0
    %242 = vmatpush2.msra.mxu0 0.0
    %243 = vmatprep.subr.mxu0 0.0
    %244 = vmatpush2.msra.mxu0 0.0
    %245 = vmatprep.subr.mxu0 0.0
    %246 = vmatpush2.msra.mxu0 0.0
    %247 = vmatprep.subr.mxu0 0.0
    %248 = vmatpush2.msra.mxu0 0.0
    %249 = vmatprep.mubr.f32.mxu0 0.0
    %250 = vmatmul.mubr.f32.gmra.mxu0 %v164
    %v251 = vpop.f32.mrf.mxu0
    %v252 = vadd.f32 %v184, %v251
    %v253 = vpop.f32.mrf.mxu0
    %254 = vdwg.mxu0
    %v255 = vmax.f32 %v252, 0.0
    %v256 = vld [vmem:[#allocation8] sm:$0xff]
    %v257 = vld [vmem:[#allocation8 + $0x8] sm:$0xff]
    %v258 = vld [vmem:[#allocation8 + $0x10] sm:$0xff]
    %v259 = vld [vmem:[#allocation8 + $0x18] sm:$0xff]
    %v260 = vld [vmem:[#allocation8 + $0x20] sm:$0xff]
    %v261 = vld [vmem:[#allocation8 + $0x28] sm:$0xff]
    %v262 = vld [vmem:[#allocation8 + $0x30] sm:$0xff]
    %v263 = vld [vmem:[#allocation8 + $0x38] sm:$0xff]
    %v264 = vld [vmem:[#allocation8 + $0x40] sm:$0xff]
    %v265 = vld [vmem:[#allocation8 + $0x48] sm:$0xff]
    %v266 = vld [vmem:[#allocation8 + $0x50] sm:$0xff]
    %v267 = vld [vmem:[#allocation8 + $0x58] sm:$0xff]
    %v268 = vld [vmem:[#allocation8 + $0x60] sm:$0xff]
    %v269 = vld [vmem:[#allocation8 + $0x68] sm:$0xff]
    %v270 = vld [vmem:[#allocation8 + $0x70] sm:$0xff]
    %v271 = vld [vmem:[#allocation8 + $0x78] sm:$0xff]
    %v272 = vlaneseq
    %v273 = vshrl.u32 %v272, 7
    %v274 = vsub.s32 0, %v273
    %v275 = vrot.slane %v78, %v274
    %276 = vmatprep.subr.mxu0 0.0
    %277 = vmatpush1.msra.mxu0 %v271
    %278 = vmatprep.subr.mxu0 0.0
    %279 = vmatpush1.msra.mxu0 %v270
    %280 = vmatprep.subr.mxu0 0.0
    %281 = vmatpush1.msra.mxu0 %v269
    %282 = vmatprep.subr.mxu0 0.0
    %283 = vmatpush1.msra.mxu0 %v268
    %284 = vmatprep.subr.mxu0 0.0
    %285 = vmatpush1.msra.mxu0 %v267
    %286 = vmatprep.subr.mxu0 0.0
    %287 = vmatpush1.msra.mxu0 %v266
    %288 = vmatprep.subr.mxu0 0.0
    %289 = vmatpush1.msra.mxu0 %v265
    %290 = vmatprep.subr.mxu0 0.0
    %291 = vmatpush1.msra.mxu0 %v264
    %292 = vmatprep.subr.mxu0 0.0
    %293 = vmatpush1.msra.mxu0 %v263
    %294 = vmatprep.subr.mxu0 0.0
    %295 = vmatpush1.msra.mxu0 %v262
    %296 = vmatprep.subr.mxu0 0.0
    %297 = vmatpush1.msra.mxu0 %v261
    %298 = vmatprep.subr.mxu0 0.0
    %299 = vmatpush1.msra.mxu0 %v260
    %300 = vmatprep.subr.mxu0 0.0
    %301 = vmatpush1.msra.mxu0 %v259
    %302 = vmatprep.subr.mxu0 0.0
    %303 = vmatpush1.msra.mxu0 %v258
    %304 = vmatprep.subr.mxu0 0.0
    %305 = vmatpush1.msra.mxu0 %v257
    %306 = vmatprep.subr.mxu0 0.0
    %307 = vmatpush1.msra.mxu0 %v256
    %308 = vmatprep.subr.mxu0 0.0
    %309 = vmatpush2.msra.mxu0 0.0
    %310 = vmatprep.subr.mxu0 0.0
    %311 = vmatpush2.msra.mxu0 0.0
    %312 = vmatprep.subr.mxu0 0.0
    %313 = vmatpush2.msra.mxu0 0.0
    %314 = vmatprep.subr.mxu0 0.0
    %315 = vmatpush2.msra.mxu0 0.0
    %316 = vmatprep.subr.mxu0 0.0
    %317 = vmatpush2.msra.mxu0 0.0
    %318 = vmatprep.subr.mxu0 0.0
    %319 = vmatpush2.msra.mxu0 0.0
    %320 = vmatprep.subr.mxu0 0.0
    %321 = vmatpush2.msra.mxu0 0.0
    %322 = vmatprep.subr.mxu0 0.0
    %323 = vmatpush2.msra.mxu0 0.0
    %324 = vmatprep.subr.mxu0 0.0
    %325 = vmatpush2.msra.mxu0 0.0
    %326 = vmatprep.subr.mxu0 0.0
    %327 = vmatpush2.msra.mxu0 0.0
    %328 = vmatprep.subr.mxu0 0.0
    %329 = vmatpush2.msra.mxu0 0.0
    %330 = vmatprep.subr.mxu0 0.0
    %331 = vmatpush2.msra.mxu0 0.0
    %332 = vmatprep.subr.mxu0 0.0
    %333 = vmatpush2.msra.mxu0 0.0
    %334 = vmatprep.subr.mxu0 0.0
    %335 = vmatpush2.msra.mxu0 0.0
    %336 = vmatprep.subr.mxu0 0.0
    %337 = vmatpush2.msra.mxu0 0.0
    %338 = vmatprep.subr.mxu0 0.0
    %339 = vmatpush2.msra.mxu0 0.0
    %340 = vmatprep.mubr.f32.mxu0 0.0
    %341 = vmatmul.mubr.f32.gmra.mxu0 %v255
    %v342 = vpop.f32.mrf.mxu0
    %v343 = vadd.f32 %v275, %v342
    %v344 = vpop.f32.mrf.mxu0
    %345 = vdwg.mxu0
    %v346 = vmax.f32 %v343, 0.0
    %v347 = vlaneseq
    %v348 = vshrl.u32 %v347, 7
    %v349 = vsub.s32 0, %v348
    %v350 = vrot.slane %v79, %v349
    %v351 = vmul.f32 %v346, %v350
    %352 = vadd.xlane.f32.xlu0 %v351
    %v353 = vpop.xlane.xlu0 %352
    %v354 = vld [vmem:[%s5 + $0x4] sm:$0x1]
    %v355 = vlaneseq
    %v356 = vshrl.u32 %v355, 7
    %v357 = vsub.s32 0, %v356
    %v358 = vrot.slane %v354, %v357
    %v359 = vadd.f32 %v353, %v358
    %360 = vst [vmem:[#allocation9] sm:$0xff] %v359
    // Predicated region
    $region38: #{tpu_custom_call.1} parent=1 // pred_check
      _
    $region39: #{tpu_custom_call.1} parent=1 // pred_check_branch
      %362 = sbr.rel (0) target = $region41
    $region40: #{tpu_custom_call.1} parent=1 // pred_region
      %s364 = ssub.s32 128, 128
      %365 = vsyncadd [#allocation5], %s364
      %s367 = sshll.u32 [#allocation9], 4
      %s368 = int_to_ptr.vmem [resolvable:$true] %s367
      %370 = dma.vmem_to_hbm [thread:$0]  %s368, 128, %s6, [#allocation5]
    $region41: #{tpu_custom_call.1} parent=1 // pred_fallthru
      _
    // Predicated region
    $region42: #{tpu_custom_call.1} parent=1 // pred_check
      _
    $region43: #{tpu_custom_call.1} parent=1 // pred_check_branch
      %372 = sbr.rel (0) target = $region45
    $region44: #{tpu_custom_call.1} parent=1 // pred_region
      %373 = dma.done [#allocation5], 128
    $region45: #{tpu_custom_call.1} parent=1 // pred_fallthru
      _
    %374 = vsyncpa [#allocation4], 1
    %375 = vsyncpa [#allocation7], 1
    %376 = vsyncpa [#allocation5], 1

</llo_original>
